<compile_context>
chip_gen: v7x
topology: tpu7x:2x2x1
jax: 0.10.0
libtpu: 0.0.40
codegen_flags: <defaults>
</compile_context>

<pallas_src>
import functools

import jax
import jax.numpy as jnp
from jax.experimental import pallas as pl
from jax.experimental.pallas import tpu as pltpu


def _round_up(x, m):
    return ((x + m - 1) // m) * m


def _patch_expand_kernel(x_ref, w_ref, gamma_ref, beta_ref, o_ref, *, eps, c):
    # x_ref:     (1, C, ts)    spatial tile of the NCHW input (channels on sublanes)
    # w_ref:     (4, C, C)     expand weight split per pixel-shuffle group
    # gamma_ref: (C, 1)        LayerNorm weight
    # beta_ref:  (C, 1)        LayerNorm bias
    # o_ref:     (1, 4, C, ts) expanded + normalized channels, grouped
    x = x_ref[0]                                  # (C, ts), native dtype for the MXU
    gamma = gamma_ref[...].astype(jnp.float32)    # (C, 1)
    beta = beta_ref[...].astype(jnp.float32)      # (C, 1)
    inv_c = 1.0 / c

    for g in range(4):                            # static unroll over the 4 groups
        yg = jnp.dot(w_ref[g], x, preferred_element_type=jnp.float32)   # (C, ts) f32
        # One-pass statistics (biased variance, matching PyTorch LayerNorm).
        s1 = jnp.sum(yg, axis=0, keepdims=True)                         # (1, ts)
        s2 = jnp.sum(yg * yg, axis=0, keepdims=True)                    # (1, ts)
        mean = s1 * inv_c
        var = jnp.maximum(s2 * inv_c - mean * mean, 0.0)
        xn = (yg - mean) * jax.lax.rsqrt(var + eps)
        o_ref[0, g] = (xn * gamma + beta).astype(o_ref.dtype)


def patch_expand_final2_forward(x, expand_weight, gamma, beta, *, eps=1e-5):
    """PatchExpand_final2 forward.

    Args:
      x: (B, C, H, W) NCHW input, C == dim.
      expand_weight: (4*C, C) PyTorch nn.Linear weight (out, in), no bias.
      gamma, beta: (C,) LayerNorm affine params.
    Returns:
      (B, C, 2*H, 2*W)
    """
    B, C, H, W = x.shape
    HW = H * W

    # Free reshape: keep NCHW layout, flatten spatial onto the lane dimension.
    x3 = x.reshape(B, C, HW)

    # Spatial tile: largest multiple of 128 that fits the streaming budget
    # (double-buffered input tile + output tile), after reserving room for the
    # (resident, constant-index) weight; capped at 2048.
    itemsize = jnp.dtype(x.dtype).itemsize
    w_bytes = 4 * C * C * itemsize
    per_col = 2 * C * itemsize + 2 * 4 * C * itemsize
    budget = 24 * 1024 * 1024
    avail = max(budget - 2 * w_bytes, 2 * 1024 * 1024)
    ts = (avail // per_col) // 128 * 128
    ts = max(128, min(2048, ts))
    ts = min(ts, _round_up(HW, 128))
    HWp = _round_up(HW, ts)
    if HWp != HW:
        x3 = jnp.pad(x3, ((0, 0), (0, 0), (0, HWp - HW)))
    S = HWp // ts

    # Split the weight per group g = p1*2 + p2 (rows k = g*C + c).
    w = expand_weight.astype(x.dtype).reshape(4, C, C)
    gamma2 = gamma.reshape(C, 1)
    beta2 = beta.reshape(C, 1)

    out = pl.pallas_call(
        functools.partial(_patch_expand_kernel, eps=eps, c=C),
        out_shape=jax.ShapeDtypeStruct((B, 4, C, HWp), x.dtype),
        grid_spec=pltpu.PrefetchScalarGridSpec(
            num_scalar_prefetch=0,
            grid=(B, S),
            in_specs=[
                pl.BlockSpec((1, C, ts), lambda b, s: (b, 0, s)),
                pl.BlockSpec((4, C, C), lambda b, s: (0, 0, 0)),
                pl.BlockSpec((C, 1), lambda b, s: (0, 0)),
                pl.BlockSpec((C, 1), lambda b, s: (0, 0)),
            ],
            out_specs=pl.BlockSpec((1, 4, C, ts), lambda b, s: (b, 0, 0, s)),
        ),
        compiler_params=pltpu.CompilerParams(
            dimension_semantics=("parallel", "parallel"),
            vmem_limit_bytes=32 * 1024 * 1024,
        ),
    )(x3, w, gamma2, beta2)

    if HWp != HW:
        out = out[..., :HW]

    # Pixel shuffle back to NCHW: group g=(p1,p2), channel c -> (2h+p1, 2w+p2).
    out = out.reshape(B, 2, 2, C, H, W)                       # (b, p1, p2, c, h, w)
    out = jnp.transpose(out, (0, 3, 4, 1, 5, 2))              # (b, c, h, p1, w, p2)
    return out.reshape(B, C, 2 * H, 2 * W)


def _reference_forward(x, expand_weight, gamma, beta, eps=1e-5):
    """Pure-JAX reference mirroring the PyTorch module exactly."""
    B, C, H, W = x.shape
    tokens = jnp.transpose(x.reshape(B, C, H * W), (0, 2, 1)).astype(jnp.float32)
    y = jnp.einsum(
        "blc,kc->blk", tokens, expand_weight.astype(jnp.float32),
        precision=jax.lax.Precision.HIGHEST,
    )                                                          # (B, HW, 4C)
    y = y.reshape(B, H, W, 2, 2, C)                            # (b, h, w, p1, p2, c)
    y = jnp.transpose(y, (0, 1, 3, 2, 4, 5)).reshape(B, 2 * H, 2 * W, C)
    mean = jnp.mean(y, axis=-1, keepdims=True)
    var = jnp.mean((y - mean) ** 2, axis=-1, keepdims=True)
    z = (y - mean) / jnp.sqrt(var + eps) * gamma + beta
    return jnp.transpose(z, (0, 3, 1, 2))                      # (B, C, 2H, 2W)


def _run_case(key, B, C, H, W):
    k1, k2, k3, k4 = jax.random.split(key, 4)
    x = jax.random.normal(k1, (B, C, H, W), dtype=jnp.float32)
    bound = 1.0 / (C ** 0.5)
    expand_weight = jax.random.uniform(
        k2, (4 * C, C), dtype=jnp.float32, minval=-bound, maxval=bound
    )
    gamma = 1.0 + 0.1 * jax.random.normal(k3, (C,), dtype=jnp.float32)
    beta = 0.1 * jax.random.normal(k4, (C,), dtype=jnp.float32)

    out = patch_expand_final2_forward(x, expand_weight, gamma, beta)
    out = jax.block_until_ready(out)

    ref = _reference_forward(x, expand_weight, gamma, beta)
    assert out.shape == (B, C, 2 * H, 2 * W), out.shape
    err = float(jnp.max(jnp.abs(out.astype(jnp.float32) - ref)))
    assert jnp.allclose(out.astype(jnp.float32), ref, atol=1e-4, rtol=1e-4), err


if __name__ == "__main__":
    key = jax.random.PRNGKey(0)
    k_a, k_b = jax.random.split(key)
    # Main case (matches the module's implied shapes).
    _run_case(k_a, B=2, C=4, H=16, W=16)
    # Second case exercising the spatial-padding path (HW not a multiple of 128).
    _run_case(k_b, B=2, C=8, H=10, W=12)
    print("KERNEL_OK")
</pallas_src>

<mosaic_0001>
module attributes {stable_mosaic.version = 11 : i64} {
  func.func @_patch_expand_kernel(%arg0: i32, %arg1: i32, %arg2: memref<1x4x256xf32, #tpu.memory_space<vmem>>, %arg3: memref<4x4x4xf32, #tpu.memory_space<vmem>>, %arg4: memref<4x1xf32, #tpu.memory_space<vmem>>, %arg5: memref<4x1xf32, #tpu.memory_space<vmem>>, %arg6: memref<1x4x4x256xf32, #tpu.memory_space<vmem>>) attributes {dimension_semantics = [#tpu.dimension_semantics<parallel>, #tpu.dimension_semantics<parallel>], iteration_bounds = array<i64: 2, 1>, scalar_prefetch = 0 : i64, scratch_operands = 0 : i64, tpu.core_type = #tpu.core_type<tc>, window_params = [{transform_indices = @transform_0, window_bounds = array<i64: 1, 4, 256>}, {pipeline_mode = #tpu.pipeline_mode<synchronous>, transform_indices = @transform_1, window_bounds = array<i64: 4, 4, 4>}, {pipeline_mode = #tpu.pipeline_mode<synchronous>, transform_indices = @transform_2, window_bounds = array<i64: 4, 1>}, {pipeline_mode = #tpu.pipeline_mode<synchronous>, transform_indices = @transform_3, window_bounds = array<i64: 4, 1>}, {transform_indices = @transform_4, window_bounds = array<i64: 1, 4, 4, 256>}]} {
    %c0 = arith.constant 0 : index
    %c0_0 = arith.constant 0 : index
    %c0_1 = arith.constant 0 : index
    %0 = vector.load %arg2[%c0, %c0_0, %c0_1] : memref<1x4x256xf32, #tpu.memory_space<vmem>>, vector<1x4x256xf32>
    %1 = vector.shape_cast %0 : vector<1x4x256xf32> to vector<4x256xf32>
    %c0_2 = arith.constant 0 : index
    %c0_3 = arith.constant 0 : index
    %2 = vector.load %arg4[%c0_2, %c0_3] : memref<4x1xf32, #tpu.memory_space<vmem>>, vector<4x1xf32>
    %c0_4 = arith.constant 0 : index
    %c0_5 = arith.constant 0 : index
    %3 = vector.load %arg5[%c0_4, %c0_5] : memref<4x1xf32, #tpu.memory_space<vmem>>, vector<4x1xf32>
    %c0_6 = arith.constant 0 : index
    %c0_7 = arith.constant 0 : index
    %c0_8 = arith.constant 0 : index
    %4 = vector.load %arg3[%c0_6, %c0_7, %c0_8] : memref<4x4x4xf32, #tpu.memory_space<vmem>>, vector<1x4x4xf32>
    %5 = vector.shape_cast %4 : vector<1x4x4xf32> to vector<4x4xf32>
    %cst = arith.constant dense<0.000000e+00> : vector<4x256xf32>
    %6 = tpu.matmul %5, %1, %cst {dimension_numbers = #tpu.dot_dimension_numbers<[1], [0], [0], [1], [0, 0, 1, 1], [], []>} : vector<4x4xf32>, vector<4x256xf32>, vector<4x256xf32> -> vector<4x256xf32>
    %cst_9 = arith.constant dense<0.000000e+00> : vector<256xf32>
    %7 = vector.multi_reduction <add>, %6, %cst_9 [0] : vector<4x256xf32> to vector<256xf32>
    %8 = vector.shape_cast %7 : vector<256xf32> to vector<1x256xf32>
    %9 = arith.mulf %6, %6 : vector<4x256xf32>
    %cst_10 = arith.constant dense<0.000000e+00> : vector<256xf32>
    %10 = vector.multi_reduction <add>, %9, %cst_10 [0] : vector<4x256xf32> to vector<256xf32>
    %11 = vector.shape_cast %10 : vector<256xf32> to vector<1x256xf32>
    %cst_11 = arith.constant 2.500000e-01 : f32
    %12 = vector.broadcast %cst_11 : f32 to vector<1x256xf32>
    %13 = arith.mulf %8, %12 : vector<1x256xf32>
    %cst_12 = arith.constant 2.500000e-01 : f32
    %14 = vector.broadcast %cst_12 : f32 to vector<1x256xf32>
    %15 = arith.mulf %11, %14 : vector<1x256xf32>
    %16 = arith.mulf %13, %13 : vector<1x256xf32>
    %17 = arith.subf %15, %16 : vector<1x256xf32>
    %cst_13 = arith.constant 0.000000e+00 : f32
    %18 = vector.broadcast %cst_13 : f32 to vector<1x256xf32>
    %19 = arith.maximumf %17, %18 : vector<1x256xf32>
    %20 = vector.broadcast %13 : vector<1x256xf32> to vector<4x256xf32>
    %21 = arith.subf %6, %20 : vector<4x256xf32>
    %cst_14 = arith.constant 9.99999974E-6 : f32
    %22 = vector.broadcast %cst_14 : f32 to vector<1x256xf32>
    %23 = arith.addf %19, %22 : vector<1x256xf32>
    %24 = math.rsqrt %23 : vector<1x256xf32>
    %25 = vector.broadcast %24 : vector<1x256xf32> to vector<4x256xf32>
    %26 = arith.mulf %21, %25 : vector<4x256xf32>
    %27 = vector.broadcast %2 : vector<4x1xf32> to vector<4x256xf32>
    %28 = arith.mulf %26, %27 : vector<4x256xf32>
    %29 = vector.broadcast %3 : vector<4x1xf32> to vector<4x256xf32>
    %30 = arith.addf %28, %29 : vector<4x256xf32>
    %c0_15 = arith.constant 0 : index
    %c0_16 = arith.constant 0 : index
    %c0_17 = arith.constant 0 : index
    %c0_18 = arith.constant 0 : index
    %31 = vector.load %arg6[%c0_15, %c0_16, %c0_17, %c0_18] : memref<1x4x4x256xf32, #tpu.memory_space<vmem>>, vector<1x1x4x256xf32>
    %32 = vector.shape_cast %31 : vector<1x1x4x256xf32> to vector<4x256xf32>
    %33 = vector.shape_cast %30 : vector<4x256xf32> to vector<1x1x4x256xf32>
    tpu.vector_store %arg6[%c0_15, %c0_16, %c0_17, %c0_18], %33 {strides = array<i32>} : memref<1x4x4x256xf32, #tpu.memory_space<vmem>>, vector<1x1x4x256xf32>,
    %c1 = arith.constant 1 : index
    %c0_19 = arith.constant 0 : index
    %c0_20 = arith.constant 0 : index
    %34 = vector.load %arg3[%c1, %c0_19, %c0_20] : memref<4x4x4xf32, #tpu.memory_space<vmem>>, vector<1x4x4xf32>
    %35 = vector.shape_cast %34 : vector<1x4x4xf32> to vector<4x4xf32>
    %cst_21 = arith.constant dense<0.000000e+00> : vector<4x256xf32>
    %36 = tpu.matmul %35, %1, %cst_21 {dimension_numbers = #tpu.dot_dimension_numbers<[1], [0], [0], [1], [0, 0, 1, 1], [], []>} : vector<4x4xf32>, vector<4x256xf32>, vector<4x256xf32> -> vector<4x256xf32>
    %cst_22 = arith.constant dense<0.000000e+00> : vector<256xf32>
    %37 = vector.multi_reduction <add>, %36, %cst_22 [0] : vector<4x256xf32> to vector<256xf32>
    %38 = vector.shape_cast %37 : vector<256xf32> to vector<1x256xf32>
    %39 = arith.mulf %36, %36 : vector<4x256xf32>
    %cst_23 = arith.constant dense<0.000000e+00> : vector<256xf32>
    %40 = vector.multi_reduction <add>, %39, %cst_23 [0] : vector<4x256xf32> to vector<256xf32>
    %41 = vector.shape_cast %40 : vector<256xf32> to vector<1x256xf32>
    %cst_24 = arith.constant 2.500000e-01 : f32
    %42 = vector.broadcast %cst_24 : f32 to vector<1x256xf32>
    %43 = arith.mulf %38, %42 : vector<1x256xf32>
    %cst_25 = arith.constant 2.500000e-01 : f32
    %44 = vector.broadcast %cst_25 : f32 to vector<1x256xf32>
    %45 = arith.mulf %41, %44 : vector<1x256xf32>
    %46 = arith.mulf %43, %43 : vector<1x256xf32>
    %47 = arith.subf %45, %46 : vector<1x256xf32>
    %cst_26 = arith.constant 0.000000e+00 : f32
    %48 = vector.broadcast %cst_26 : f32 to vector<1x256xf32>
    %49 = arith.maximumf %47, %48 : vector<1x256xf32>
    %50 = vector.broadcast %43 : vector<1x256xf32> to vector<4x256xf32>
    %51 = arith.subf %36, %50 : vector<4x256xf32>
    %cst_27 = arith.constant 9.99999974E-6 : f32
    %52 = vector.broadcast %cst_27 : f32 to vector<1x256xf32>
    %53 = arith.addf %49, %52 : vector<1x256xf32>
    %54 = math.rsqrt %53 : vector<1x256xf32>
    %55 = vector.broadcast %54 : vector<1x256xf32> to vector<4x256xf32>
    %56 = arith.mulf %51, %55 : vector<4x256xf32>
    %57 = vector.broadcast %2 : vector<4x1xf32> to vector<4x256xf32>
    %58 = arith.mulf %56, %57 : vector<4x256xf32>
    %59 = vector.broadcast %3 : vector<4x1xf32> to vector<4x256xf32>
    %60 = arith.addf %58, %59 : vector<4x256xf32>
    %c0_28 = arith.constant 0 : index
    %c1_29 = arith.constant 1 : index
    %c0_30 = arith.constant 0 : index
    %c0_31 = arith.constant 0 : index
    %61 = vector.load %arg6[%c0_28, %c1_29, %c0_30, %c0_31] : memref<1x4x4x256xf32, #tpu.memory_space<vmem>>, vector<1x1x4x256xf32>
    %62 = vector.shape_cast %61 : vector<1x1x4x256xf32> to vector<4x256xf32>
    %63 = vector.shape_cast %60 : vector<4x256xf32> to vector<1x1x4x256xf32>
    tpu.vector_store %arg6[%c0_28, %c1_29, %c0_30, %c0_31], %63 {strides = array<i32>} : memref<1x4x4x256xf32, #tpu.memory_space<vmem>>, vector<1x1x4x256xf32>,
    %c2 = arith.constant 2 : index
    %c0_32 = arith.constant 0 : index
    %c0_33 = arith.constant 0 : index
    %64 = vector.load %arg3[%c2, %c0_32, %c0_33] : memref<4x4x4xf32, #tpu.memory_space<vmem>>, vector<1x4x4xf32>
    %65 = vector.shape_cast %64 : vector<1x4x4xf32> to vector<4x4xf32>
    %cst_34 = arith.constant dense<0.000000e+00> : vector<4x256xf32>
    %66 = tpu.matmul %65, %1, %cst_34 {dimension_numbers = #tpu.dot_dimension_numbers<[1], [0], [0], [1], [0, 0, 1, 1], [], []>} : vector<4x4xf32>, vector<4x256xf32>, vector<4x256xf32> -> vector<4x256xf32>
    %cst_35 = arith.constant dense<0.000000e+00> : vector<256xf32>
    %67 = vector.multi_reduction <add>, %66, %cst_35 [0] : vector<4x256xf32> to vector<256xf32>
    %68 = vector.shape_cast %67 : vector<256xf32> to vector<1x256xf32>
    %69 = arith.mulf %66, %66 : vector<4x256xf32>
    %cst_36 = arith.constant dense<0.000000e+00> : vector<256xf32>
    %70 = vector.multi_reduction <add>, %69, %cst_36 [0] : vector<4x256xf32> to vector<256xf32>
    %71 = vector.shape_cast %70 : vector<256xf32> to vector<1x256xf32>
    %cst_37 = arith.constant 2.500000e-01 : f32
    %72 = vector.broadcast %cst_37 : f32 to vector<1x256xf32>
    %73 = arith.mulf %68, %72 : vector<1x256xf32>
    %cst_38 = arith.constant 2.500000e-01 : f32
    %74 = vector.broadcast %cst_38 : f32 to vector<1x256xf32>
    %75 = arith.mulf %71, %74 : vector<1x256xf32>
    %76 = arith.mulf %73, %73 : vector<1x256xf32>
    %77 = arith.subf %75, %76 : vector<1x256xf32>
    %cst_39 = arith.constant 0.000000e+00 : f32
    %78 = vector.broadcast %cst_39 : f32 to vector<1x256xf32>
    %79 = arith.maximumf %77, %78 : vector<1x256xf32>
    %80 = vector.broadcast %73 : vector<1x256xf32> to vector<4x256xf32>
    %81 = arith.subf %66, %80 : vector<4x256xf32>
    %cst_40 = arith.constant 9.99999974E-6 : f32
    %82 = vector.broadcast %cst_40 : f32 to vector<1x256xf32>
    %83 = arith.addf %79, %82 : vector<1x256xf32>
    %84 = math.rsqrt %83 : vector<1x256xf32>
    %85 = vector.broadcast %84 : vector<1x256xf32> to vector<4x256xf32>
    %86 = arith.mulf %81, %85 : vector<4x256xf32>
    %87 = vector.broadcast %2 : vector<4x1xf32> to vector<4x256xf32>
    %88 = arith.mulf %86, %87 : vector<4x256xf32>
    %89 = vector.broadcast %3 : vector<4x1xf32> to vector<4x256xf32>
    %90 = arith.addf %88, %89 : vector<4x256xf32>
    %c0_41 = arith.constant 0 : index
    %c2_42 = arith.constant 2 : index
    %c0_43 = arith.constant 0 : index
    %c0_44 = arith.constant 0 : index
    %91 = vector.load %arg6[%c0_41, %c2_42, %c0_43, %c0_44] : memref<1x4x4x256xf32, #tpu.memory_space<vmem>>, vector<1x1x4x256xf32>
    %92 = vector.shape_cast %91 : vector<1x1x4x256xf32> to vector<4x256xf32>
    %93 = vector.shape_cast %90 : vector<4x256xf32> to vector<1x1x4x256xf32>
    tpu.vector_store %arg6[%c0_41, %c2_42, %c0_43, %c0_44], %93 {strides = array<i32>} : memref<1x4x4x256xf32, #tpu.memory_space<vmem>>, vector<1x1x4x256xf32>,
    %c3 = arith.constant 3 : index
    %c0_45 = arith.constant 0 : index
    %c0_46 = arith.constant 0 : index
    %94 = vector.load %arg3[%c3, %c0_45, %c0_46] : memref<4x4x4xf32, #tpu.memory_space<vmem>>, vector<1x4x4xf32>
    %95 = vector.shape_cast %94 : vector<1x4x4xf32> to vector<4x4xf32>
    %cst_47 = arith.constant dense<0.000000e+00> : vector<4x256xf32>
    %96 = tpu.matmul %95, %1, %cst_47 {dimension_numbers = #tpu.dot_dimension_numbers<[1], [0], [0], [1], [0, 0, 1, 1], [], []>} : vector<4x4xf32>, vector<4x256xf32>, vector<4x256xf32> -> vector<4x256xf32>
    %cst_48 = arith.constant dense<0.000000e+00> : vector<256xf32>
    %97 = vector.multi_reduction <add>, %96, %cst_48 [0] : vector<4x256xf32> to vector<256xf32>
    %98 = vector.shape_cast %97 : vector<256xf32> to vector<1x256xf32>
    %99 = arith.mulf %96, %96 : vector<4x256xf32>
    %cst_49 = arith.constant dense<0.000000e+00> : vector<256xf32>
    %100 = vector.multi_reduction <add>, %99, %cst_49 [0] : vector<4x256xf32> to vector<256xf32>
    %101 = vector.shape_cast %100 : vector<256xf32> to vector<1x256xf32>
    %cst_50 = arith.constant 2.500000e-01 : f32
    %102 = vector.broadcast %cst_50 : f32 to vector<1x256xf32>
    %103 = arith.mulf %98, %102 : vector<1x256xf32>
    %cst_51 = arith.constant 2.500000e-01 : f32
    %104 = vector.broadcast %cst_51 : f32 to vector<1x256xf32>
    %105 = arith.mulf %101, %104 : vector<1x256xf32>
    %106 = arith.mulf %103, %103 : vector<1x256xf32>
    %107 = arith.subf %105, %106 : vector<1x256xf32>
    %cst_52 = arith.constant 0.000000e+00 : f32
    %108 = vector.broadcast %cst_52 : f32 to vector<1x256xf32>
    %109 = arith.maximumf %107, %108 : vector<1x256xf32>
    %110 = vector.broadcast %103 : vector<1x256xf32> to vector<4x256xf32>
    %111 = arith.subf %96, %110 : vector<4x256xf32>
    %cst_53 = arith.constant 9.99999974E-6 : f32
    %112 = vector.broadcast %cst_53 : f32 to vector<1x256xf32>
    %113 = arith.addf %109, %112 : vector<1x256xf32>
    %114 = math.rsqrt %113 : vector<1x256xf32>
    %115 = vector.broadcast %114 : vector<1x256xf32> to vector<4x256xf32>
    %116 = arith.mulf %111, %115 : vector<4x256xf32>
    %117 = vector.broadcast %2 : vector<4x1xf32> to vector<4x256xf32>
    %118 = arith.mulf %116, %117 : vector<4x256xf32>
    %119 = vector.broadcast %3 : vector<4x1xf32> to vector<4x256xf32>
    %120 = arith.addf %118, %119 : vector<4x256xf32>
    %c0_54 = arith.constant 0 : index
    %c3_55 = arith.constant 3 : index
    %c0_56 = arith.constant 0 : index
    %c0_57 = arith.constant 0 : index
    %121 = vector.load %arg6[%c0_54, %c3_55, %c0_56, %c0_57] : memref<1x4x4x256xf32, #tpu.memory_space<vmem>>, vector<1x1x4x256xf32>
    %122 = vector.shape_cast %121 : vector<1x1x4x256xf32> to vector<4x256xf32>
    %123 = vector.shape_cast %120 : vector<4x256xf32> to vector<1x1x4x256xf32>
    tpu.vector_store %arg6[%c0_54, %c3_55, %c0_56, %c0_57], %123 {strides = array<i32>} : memref<1x4x4x256xf32, #tpu.memory_space<vmem>>, vector<1x1x4x256xf32>,
    return
  }
  func.func @transform_0(%arg0: i32, %arg1: i32) -> (i32, i32, i32) {
    %c0_i32 = arith.constant 0 : i32
    %c0_i32_0 = arith.constant 0 : i32
    return %arg0, %c0_i32, %arg1 : i32, i32, i32
  }
  func.func @transform_1(%arg0: i32, %arg1: i32) -> (i32, i32, i32) {
    %c0_i32 = arith.constant 0 : i32
    %c0_i32_0 = arith.constant 0 : i32
    %c0_i32_1 = arith.constant 0 : i32
    %c0_i32_2 = arith.constant 0 : i32
    return %c0_i32, %c0_i32_0, %c0_i32_1 : i32, i32, i32
  }
  func.func @transform_2(%arg0: i32, %arg1: i32) -> (i32, i32) {
    %c0_i32 = arith.constant 0 : i32
    %c0_i32_0 = arith.constant 0 : i32
    %c0_i32_1 = arith.constant 0 : i32
    return %c0_i32, %c0_i32_0 : i32, i32
  }
  func.func @transform_3(%arg0: i32, %arg1: i32) -> (i32, i32) {
    %c0_i32 = arith.constant 0 : i32
    %c0_i32_0 = arith.constant 0 : i32
    %c0_i32_1 = arith.constant 0 : i32
    return %c0_i32, %c0_i32_0 : i32, i32
  }
  func.func @transform_4(%arg0: i32, %arg1: i32) -> (i32, i32, i32, i32) {
    %c0_i32 = arith.constant 0 : i32
    %c0_i32_0 = arith.constant 0 : i32
    %c0_i32_1 = arith.constant 0 : i32
    return %arg0, %c0_i32, %c0_i32_0, %arg1 : i32, i32, i32, i32
  }
}

</mosaic_0001>

<llo_original>
// kernel: tpu_custom_call.1
$region0: #{tpu_custom_call.1}
  #allocation0 [shape = 'u32[]', space=smem, size = 0x4, offset = 0x4, fixed_abs, tag = 'smem constant byte address 0x4 - core index']
  #allocation1 [shape = 'u32[144,128]{1,0:T(1,128)}', space=vmem, size = 0x12000, scoped, tag = 'internal scratch']
  %s0 = inlined_call_operand.hbm [shape: f32[2,4,256], index: 0, kind: input, shape index: {}]
  %s1 = inlined_call_operand.hbm [shape: f32[4,4,4], index: 1, kind: input, shape index: {}]
  %s2 = inlined_call_operand.vmem [shape: f32[4,1], index: 2, kind: input, shape index: {}]
  %s3 = inlined_call_operand.vmem [shape: f32[4,1], index: 3, kind: input, shape index: {}]
  %s4 = inlined_call_operand.hbm [shape: f32[2,4,4,256], index: 4, kind: output, shape index: {}]
  %s5 = sld [smem:[#allocation0]]
  $region57: #{tpu_custom_call.1} parent=0
    _
  %s7 = ssub.s32 1, %s5
  %s8 = scalar_select 0, %s7, %s5
  $region1: #{tpu_custom_call.1} parent=0
    #allocation2 [shape = 'u8[8192]{0}', space=vmem, size = 0x2000, scoped, tag = 'input window, operand 0']
    #allocation3 [shape = 's32[2]{0}', space=sflag, size = 0x8, scoped, tag = 'scoped memory for tpu_custom_call.1']
    #allocation4 [shape = 's32[2]{0}', space=sflag, size = 0x8, scoped, tag = 'scoped memory for tpu_custom_call.1']
    #allocation5 [shape = 'u8[8192]{0}', space=vmem, size = 0x2000, scoped, tag = 'input window, operand 1, single buffered']
    #allocation6 [shape = 's32[1]{0}', space=sflag, size = 0x4, scoped, tag = 'scoped memory for tpu_custom_call.1']
    #allocation7 [shape = 'u8[32768]{0}', space=vmem, size = 0x8000, scoped, tag = 'output window, operand 0']
    %9 = vsyncpa [#allocation3], 0
    %s10 = scalar_lea.sflag [#allocation3], 1
    %11 = vsyncpa %s10, 0
    %12 = vsyncpa [#allocation6], 0
    %13 = vsyncpa [#allocation4], 0
    %s14 = scalar_lea.sflag [#allocation4], 1
    %15 = vsyncpa %s14, 0
    loop: start=0, step=1, limit=4
    $region2: #{tpu_custom_call.1} parent=1 // loop_pre_header
      _
    $region3: #{tpu_custom_call.1} parent=1 // loop_header
      %s17 = sphi 0, %s21
      %p18 = scmp.ge.s32.totalorder %s17, 4
      %s24 = sphi 0, %s36
      %s25 = sphi 0, %s32
      %s26 = sphi 0, %s24
      %s27 = sphi 0, %s25
      %s28 = sphi 0, %s26
      %s29 = sphi 0, %s27
      %s41 = sphi 0, %s43
      %s44 = sphi 0, %s41
      %s45 = sphi 0, %s44
      %s61 = sphi 0, %s45
      %s65 = sphi 0, %s65
      %s67 = sphi 0, %s65
      %s68 = sphi 0, %s67
      %s82 = sphi 0, %s68
      %s86 = sphi 0, %s86
      %s88 = sphi 0, %s86
      %s89 = sphi 0, %s88
      %s103 = sphi 0, %s89
      %s107 = sphi 0, %s107
      %s109 = sphi 0, %s107
      %s110 = sphi 0, %s109
      %s124 = sphi 0, %s110
      %s132 = sphi 0, %s134
      %s135 = sphi 0, %s132
      %s136 = sphi 0, %s135
      %s152 = sphi 0, %s136
    $region4: #{tpu_custom_call.1} parent=1 // loop_header_branch
      %20 = sbr.rel (%p18) target = $region8
    $region5: #{tpu_custom_call.1} parent=1 // loop_body
      %s22 = ssub.s32 %s17, 1
      %s23 = ssub.s32 %s17, 2
      %s30 = sadd.s32 1, %s25
      %p31 = scmp.ge.s32.totalorder %s30, 1
      %s32 = scalar_select %p31, 0, %s30
      %s33 = sadd.s32 1, %s24
      %s34 = scalar_select %p31, %s33, %s24
      %p35 = scmp.ge.s32.totalorder %s34, 2
      %s36 = scalar_select %p35, 0, %s34
      %s37 = ssub.s32 %s24, %s36
      %s38 = ssub.s32 %s25, %s32
      %s39 = sor.u32 %s37, %s38
      %p40 = scmp.eq.s32.totalorder %s39, 0
      %s42 = sadd.s32 %s41, 1
      %s43 = scalar_select %p40, %s41, %s42
      %p46 = pneg %p40
      %p47 = scmp.eq.s32.totalorder %s17, 1
      %p48 = por %p46, %p47
      %p49 = scmp.ne.s32.totalorder %s41, %s44
      %p50 = scmp.eq.s32.totalorder %s17, 0
      %p51 = por %p49, %p50
      %p52 = scmp.ne.s32.totalorder %s41, %s44
      %p53 = scmp.eq.s32.totalorder %s22, 1
      %p54 = por %p52, %p53
      %p55 = scmp.ne.s32.totalorder %s44, %s45
      %p56 = scmp.eq.s32.totalorder %s22, 0
      %p57 = por %p55, %p56
      %p58 = scmp.ne.s32.totalorder %s44, %s45
      %p59 = scmp.eq.s32.totalorder %s23, 1
      %p60 = por %p58, %p59
      %p62 = scmp.ne.s32.totalorder %s45, %s61
      %p63 = scmp.eq.s32.totalorder %s23, 0
      %p64 = por %p62, %p63
      %s66 = sadd.s32 %s65, 1
      %p69 = scmp.eq.s32.totalorder %s17, 1
      %p70 = scmp.ne.s32.totalorder %s65, %s67
      %p71 = scmp.eq.s32.totalorder %s17, 0
      %p72 = por %p70, %p71
      %p73 = scmp.ne.s32.totalorder %s65, %s67
      %p74 = scmp.eq.s32.totalorder %s22, 1
      %p75 = por %p73, %p74
      %p76 = scmp.ne.s32.totalorder %s67, %s68
      %p77 = scmp.eq.s32.totalorder %s22, 0
      %p78 = por %p76, %p77
      %p79 = scmp.ne.s32.totalorder %s67, %s68
      %p80 = scmp.eq.s32.totalorder %s23, 1
      %p81 = por %p79, %p80
      %p83 = scmp.ne.s32.totalorder %s68, %s82
      %p84 = scmp.eq.s32.totalorder %s23, 0
      %p85 = por %p83, %p84
      %s87 = sadd.s32 %s86, 1
      %p90 = scmp.eq.s32.totalorder %s17, 1
      %p91 = scmp.ne.s32.totalorder %s86, %s88
      %p92 = scmp.eq.s32.totalorder %s17, 0
      %p93 = por %p91, %p92
      %p94 = scmp.ne.s32.totalorder %s86, %s88
      %p95 = scmp.eq.s32.totalorder %s22, 1
      %p96 = por %p94, %p95
      %p97 = scmp.ne.s32.totalorder %s88, %s89
      %p98 = scmp.eq.s32.totalorder %s22, 0
      %p99 = por %p97, %p98
      %p100 = scmp.ne.s32.totalorder %s88, %s89
      %p101 = scmp.eq.s32.totalorder %s23, 1
      %p102 = por %p100, %p101
      %p104 = scmp.ne.s32.totalorder %s89, %s103
      %p105 = scmp.eq.s32.totalorder %s23, 0
      %p106 = por %p104, %p105
      %s108 = sadd.s32 %s107, 1
      %p111 = scmp.eq.s32.totalorder %s17, 1
      %p112 = scmp.ne.s32.totalorder %s107, %s109
      %p113 = scmp.eq.s32.totalorder %s17, 0
      %p114 = por %p112, %p113
      %p115 = scmp.ne.s32.totalorder %s107, %s109
      %p116 = scmp.eq.s32.totalorder %s22, 1
      %p117 = por %p115, %p116
      %p118 = scmp.ne.s32.totalorder %s109, %s110
      %p119 = scmp.eq.s32.totalorder %s22, 0
      %p120 = por %p118, %p119
      %p121 = scmp.ne.s32.totalorder %s109, %s110
      %p122 = scmp.eq.s32.totalorder %s23, 1
      %p123 = por %p121, %p122
      %p125 = scmp.ne.s32.totalorder %s110, %s124
      %p126 = scmp.eq.s32.totalorder %s23, 0
      %p127 = por %p125, %p126
      %s128 = ssub.s32 %s24, %s36
      %s129 = ssub.s32 %s25, %s32
      %s130 = sor.u32 %s128, %s129
      %p131 = scmp.eq.s32.totalorder %s130, 0
      %s133 = sadd.s32 %s132, 1
      %s134 = scalar_select %p131, %s132, %s133
      %p137 = pneg %p131
      %p138 = scmp.eq.s32.totalorder %s17, 1
      %p139 = por %p137, %p138
      %p140 = scmp.ne.s32.totalorder %s132, %s135
      %p141 = scmp.eq.s32.totalorder %s17, 0
      %p142 = por %p140, %p141
      %p143 = scmp.ne.s32.totalorder %s132, %s135
      %p144 = scmp.eq.s32.totalorder %s22, 1
      %p145 = por %p143, %p144
      %p146 = scmp.ne.s32.totalorder %s135, %s136
      %p147 = scmp.eq.s32.totalorder %s22, 0
      %p148 = por %p146, %p147
      %p149 = scmp.ne.s32.totalorder %s135, %s136
      %p150 = scmp.eq.s32.totalorder %s23, 1
      %p151 = por %p149, %p150
      %p153 = scmp.ne.s32.totalorder %s136, %s152
      %p154 = scmp.eq.s32.totalorder %s23, 0
      %p155 = por %p153, %p154
      %p156 = scmp.le.s32.totalorder 1, %s17
      %p157 = scmp.lt.s32.totalorder %s17, 3
      %p158 = pnand %p156, %p157
      %p159 = pneg %p158
      // Predicated region
      $region9: #{tpu_custom_call.1} parent=5 // pred_check
        _
      $region10: #{tpu_custom_call.1} parent=5 // pred_check_branch
        %161 = sbr.rel (%p158) target = $region12
      $region11: #{tpu_custom_call.1} parent=5 // pred_region
        %s162 = ssub.s32 %s17, 1
        // Predicated region
        $region13: #{tpu_custom_call.1} parent=11 // pred_check
          %p163 = pneg %p78
        $region14: #{tpu_custom_call.1} parent=11 // pred_check_branch
          %165 = sbr.rel (%p163) target = $region16
        $region15: #{tpu_custom_call.1} parent=11 // pred_region
          %s167 = ssub.s32 256, 256
          %168 = vsyncadd [#allocation6], %s167
          %s169 = sshll.u32 [#allocation5], 4
          %s170 = int_to_ptr.vmem [resolvable:$true] %s169
          %175 = dma.hbm_to_vmem [thread:$0]  %s1, 256, %s170, [#allocation6], 64, 64, 4
        $region16: #{tpu_custom_call.1} parent=11 // pred_fallthru
          _
        // Predicated region
        $region17: #{tpu_custom_call.1} parent=11 // pred_check
          %p176 = pneg %p99
        $region18: #{tpu_custom_call.1} parent=11 // pred_check_branch
          %178 = sbr.rel (%p176) target = $region20
        $region19: #{tpu_custom_call.1} parent=11 // pred_region
          _
        $region20: #{tpu_custom_call.1} parent=11 // pred_fallthru
          _
        // Predicated region
        $region21: #{tpu_custom_call.1} parent=11 // pred_check
          %p179 = pneg %p120
        $region22: #{tpu_custom_call.1} parent=11 // pred_check_branch
          %181 = sbr.rel (%p179) target = $region24
        $region23: #{tpu_custom_call.1} parent=11 // pred_region
          _
        $region24: #{tpu_custom_call.1} parent=11 // pred_fallthru
          _
      $region12: #{tpu_custom_call.1} parent=5 // pred_fallthru
        _
      %p182 = scmp.lt.s32.totalorder %s17, 2
      // Predicated region
      $region25: #{tpu_custom_call.1} parent=5 // pred_check
        %p183 = pneg %p182
      $region26: #{tpu_custom_call.1} parent=5 // pred_check_branch
        %185 = sbr.rel (%p183) target = $region28
      $region27: #{tpu_custom_call.1} parent=5 // pred_region
        // Predicated region
        $region29: #{tpu_custom_call.1} parent=27 // pred_check
          %p186 = pneg %p51
        $region30: #{tpu_custom_call.1} parent=27 // pred_check_branch
          %188 = sbr.rel (%p186) target = $region32
        $region31: #{tpu_custom_call.1} parent=27 // pred_region
          %s189 = sand.u32 %s41, 1
          %s190 = scalar_lea.sflag [#allocation3], %s189
          %s191 = sand.u32 %s41, 1
          %s192 = smul.addr %s191, 8
          %s193 = scalar_lea.vmem [#allocation2], %s192
          %s194 = smul.u32 2, %s25
          %s196 = ssub.s32 128, 128
          %197 = vsyncadd %s190, %s196
          %s198 = smul.addr %s24, 2
          %s199 = sadd.s32 %s194, %s198
          %s200 = smul.addr %s199, 64
          %s201 = scalar_lea.hbm %s0, %s200
          %s203 = sshll.u32 %s193, 4
          %s204 = int_to_ptr.vmem [resolvable:$true] %s203
          %206 = dma.hbm_to_vmem [thread:$0]  %s201, 128, %s204, %s190
        $region32: #{tpu_custom_call.1} parent=27 // pred_fallthru
          _
      $region28: #{tpu_custom_call.1} parent=5 // pred_fallthru
        _
      %p207 = scmp.le.s32.totalorder 1, %s17
      %p208 = scmp.lt.s32.totalorder %s17, 3
      %p209 = pnand %p207, %p208
      %p210 = pneg %p209
      // Predicated region
      $region33: #{tpu_custom_call.1} parent=5 // pred_check
        _
      $region34: #{tpu_custom_call.1} parent=5 // pred_check_branch
        %212 = sbr.rel (%p209) target = $region36
      $region35: #{tpu_custom_call.1} parent=5 // pred_region
        %s213 = ssub.s32 %s17, 1
        %s214 = sand.u32 %s44, 1
        %s215 = scalar_lea.sflag [#allocation3], %s214
        %s216 = sand.u32 %s44, 1
        %s217 = smul.addr %s216, 8
        %s218 = scalar_lea.vmem [#allocation2], %s217
        // Predicated region
        $region37: #{tpu_custom_call.1} parent=35 // pred_check
          %p219 = pneg %p57
        $region38: #{tpu_custom_call.1} parent=35 // pred_check_branch
          %221 = sbr.rel (%p219) target = $region40
        $region39: #{tpu_custom_call.1} parent=35 // pred_region
          %222 = dma.done %s215, 128
        $region40: #{tpu_custom_call.1} parent=35 // pred_fallthru
          _
        // Predicated region
        $region41: #{tpu_custom_call.1} parent=35 // pred_check
          %p223 = pneg %p78
        $region42: #{tpu_custom_call.1} parent=35 // pred_check_branch
          %225 = sbr.rel (%p223) target = $region44
        $region43: #{tpu_custom_call.1} parent=35 // pred_region
          %226 = dma.done [#allocation6], 256
        $region44: #{tpu_custom_call.1} parent=35 // pred_fallthru
          _
        %s227 = sand.u32 %s44, 1
        %s228 = scalar_lea.sflag [#allocation3], %s227
        %s229 = sand.u32 %s44, 1
        %s230 = smul.addr %s229, 8
        %s231 = scalar_lea.vmem [#allocation2], %s230
        %p232 = pneg %p57
        %p233 = pneg %p54
        %p234 = pneg %p78
        %p235 = pneg %p75
        %p236 = pneg %p99
        %p237 = pneg %p96
        %p238 = pneg %p120
        %p239 = pneg %p117
        %p240 = pneg %p148
        %p241 = pneg %p145
        %s242 = sand.u32 %s135, 1
        %s243 = scalar_lea.sflag [#allocation4], %s242
        %s244 = sand.u32 %s135, 1
        %s245 = smul.addr %s244, 32
        %s246 = scalar_lea.vmem [#allocation7], %s245
        %s247 = smul.u32 2, %s27
        %s248 = smul.u32 2, %s27
        %v249 = vld [vmem:[%s218] sm:$0xff]
        %v250 = vld [vmem:[%s2] sm:$0xf]
        %v251 = vld [vmem:[%s3] sm:$0xf]
        %v252 = vld [vmem:[#allocation5] sm:$0xf]
        %v254 = vcombine.high %v249, %v249
        %vm255 = vcmask 31744
        %v257 = vsel %vm255, %v252, 0
        %vm259 = vcmask 1043456
        %v260 = vsel %vm259, %v249, 0
        %v262 = vsel %vm259, %v254, 0
        %264 = vmatprep.subr.mxu0 %v262
        %265 = vmatpush1.msra.mxu0 %v260
        %266 = vmatprep.subr.mxu0 0.0
        %267 = vmatpush1.msra.mxu0 0.0
        %268 = vmatprep.subr.mxu0 0.0
        %269 = vmatpush1.msra.mxu0 0.0
        %270 = vmatprep.subr.mxu0 0.0
        %271 = vmatpush1.msra.mxu0 0.0
        %272 = vmatprep.subr.mxu0 0.0
        %273 = vmatpush1.msra.mxu0 0.0
        %274 = vmatprep.subr.mxu0 0.0
        %275 = vmatpush1.msra.mxu0 0.0
        %276 = vmatprep.subr.mxu0 0.0
        %277 = vmatpush1.msra.mxu0 0.0
        %278 = vmatprep.subr.mxu0 0.0
        %279 = vmatpush1.msra.mxu0 0.0
        %280 = vmatprep.subr.mxu0 0.0
        %281 = vmatpush1.msra.mxu0 0.0
        %282 = vmatprep.subr.mxu0 0.0
        %283 = vmatpush1.msra.mxu0 0.0
        %284 = vmatprep.subr.mxu0 0.0
        %285 = vmatpush1.msra.mxu0 0.0
        %286 = vmatprep.subr.mxu0 0.0
        %287 = vmatpush1.msra.mxu0 0.0
        %288 = vmatprep.subr.mxu0 0.0
        %289 = vmatpush1.msra.mxu0 0.0
        %290 = vmatprep.subr.mxu0 0.0
        %291 = vmatpush1.msra.mxu0 0.0
        %292 = vmatprep.subr.mxu0 0.0
        %293 = vmatpush1.msra.mxu0 0.0
        %294 = vmatprep.subr.mxu0 0.0
        %295 = vmatpush1.msra.mxu0 0.0
        %296 = vmatprep.subr.mxu0 0.0
        %297 = vmatpush1.msra.mxu0 0.0
        %298 = vmatprep.subr.mxu0 0.0
        %299 = vmatpush1.msra.mxu0 0.0
        %300 = vmatprep.subr.mxu0 0.0
        %301 = vmatpush1.msra.mxu0 0.0
        %302 = vmatprep.subr.mxu0 0.0
        %303 = vmatpush1.msra.mxu0 0.0
        %304 = vmatprep.subr.mxu0 0.0
        %305 = vmatpush1.msra.mxu0 0.0
        %306 = vmatprep.subr.mxu0 0.0
        %307 = vmatpush1.msra.mxu0 0.0
        %308 = vmatprep.subr.mxu0 0.0
        %309 = vmatpush1.msra.mxu0 0.0
        %310 = vmatprep.subr.mxu0 0.0
        %311 = vmatpush1.msra.mxu0 0.0
        %312 = vmatprep.subr.mxu0 0.0
        %313 = vmatpush1.msra.mxu0 0.0
        %314 = vmatprep.subr.mxu0 0.0
        %315 = vmatpush1.msra.mxu0 0.0
        %316 = vmatprep.subr.mxu0 0.0
        %317 = vmatpush1.msra.mxu0 0.0
        %318 = vmatprep.subr.mxu0 0.0
        %319 = vmatpush1.msra.mxu0 0.0
        %320 = vmatprep.subr.mxu0 0.0
        %321 = vmatpush1.msra.mxu0 0.0
        %322 = vmatprep.subr.mxu0 0.0
        %323 = vmatpush1.msra.mxu0 0.0
        %324 = vmatprep.subr.mxu0 0.0
        %325 = vmatpush1.msra.mxu0 0.0
        %326 = vmatprep.subr.mxu0 0.0
        %327 = vmatpush1.msra.mxu0 0.0
        %328 = vmatprep.mubr.f32.mxu0 0.0
        %329 = vmatmul.mubr.f32.gmra.mrb[0].mxu0 %v257
        %v330 = vpop.f32.mrb[0].mxu0
        %v331 = vadd.f32 0.0, %v330
        %v332 = vpop.f32.mrb[0].mxu0
        %v333 = vadd.f32 0.0, %v332
        %334 = vdwg.mxu0
        %v335 = vsel %vm259, %v331, 0.0
        %v336 = vrot.slane %v335, 4
        %v337 = vadd.f32 %v335, %v336
        %v338 = vrot.slane %v337, 2
        %v339 = vadd.f32 %v337, %v338
        %v340 = vrot.slane %v339, 1
        %v341 = vadd.f32 %v339, %v340
        %v342 = vsel %vm259, %v333, 0.0
        %v343 = vrot.slane %v342, 4
        %v344 = vadd.f32 %v342, %v343
        %v345 = vrot.slane %v344, 2
        %v346 = vadd.f32 %v344, %v345
        %v347 = vrot.slane %v346, 1
        %v348 = vadd.f32 %v346, %v347
        %v349 = vmul.f32 %v331, %v331
        %v350 = vmul.f32 %v333, %v333
        %v351 = vsel %vm259, %v349, 0.0
        %v352 = vrot.slane %v351, 4
        %v353 = vadd.f32 %v351, %v352
        %v354 = vrot.slane %v353, 2
        %v355 = vadd.f32 %v353, %v354
        %v356 = vrot.slane %v355, 1
        %v357 = vadd.f32 %v355, %v356
        %v358 = vsel %vm259, %v350, 0.0
        %v359 = vrot.slane %v358, 4
        %v360 = vadd.f32 %v358, %v359
        %v361 = vrot.slane %v360, 2
        %v362 = vadd.f32 %v360, %v361
        %v363 = vrot.slane %v362, 1
        %v364 = vadd.f32 %v362, %v363
        %v365 = vmul.f32 %v341, 0.25
        %v366 = vmul.f32 %v348, 0.25
        %v367 = vmul.f32 %v357, 0.25
        %v368 = vmul.f32 %v364, 0.25
        %v369 = vmul.f32 %v365, %v365
        %v370 = vmul.f32 %v366, %v366
        %v371 = vsub.f32 %v367, %v369
        %v372 = vsub.f32 %v368, %v370
        %v373 = vmax.f32 %v371, 0.0
        %v374 = vmax.f32 %v372, 0.0
        %v375 = vsub.f32 %v331, %v365
        %v376 = vsub.f32 %v333, %v366
        %v377 = vadd.f32 %v373, 1e-05
        %v378 = vadd.f32 %v374, 1e-05
        %v379 = vrsqrt.pop %v377
        %v380 = vrsqrt.pop %v378
        %v381 = vmul.f32 %v375, %v379
        %v382 = vmul.f32 %v376, %v380
        %384 = vset.pattern.permute.xlu0 0
        %385 = vperm.xlu0 %384, %v250
        %v386 = vpop.permute.xlu0 %385
        %v388 = vmul.f32 %v381, %v386
        %v389 = vmul.f32 %v382, %v386
        %391 = vset.pattern.permute.xlu0 0
        %392 = vperm.xlu0 %391, %v251
        %v393 = vpop.permute.xlu0 %392
        %v395 = vadd.f32 %v388, %v393
        %v396 = vadd.f32 %v389, %v393
        %v399 = vcombine.low %v395, %v396
        %401 = vst [vmem:[%s246] sm:$0xff] %v399
        %s402 = scalar_lea.vmem [#allocation5], 4
        %v403 = vld [vmem:[%s402] sm:$0xf]
        %v405 = vsel %vm255, %v403, 0
        %407 = vmatprep.subr.mxu0 %v262
        %408 = vmatpush1.msra.mxu0 %v260
        %409 = vmatprep.subr.mxu0 0.0
        %410 = vmatpush1.msra.mxu0 0.0
        %411 = vmatprep.subr.mxu0 0.0
        %412 = vmatpush1.msra.mxu0 0.0
        %413 = vmatprep.subr.mxu0 0.0
        %414 = vmatpush1.msra.mxu0 0.0
        %415 = vmatprep.subr.mxu0 0.0
        %416 = vmatpush1.msra.mxu0 0.0
        %417 = vmatprep.subr.mxu0 0.0
        %418 = vmatpush1.msra.mxu0 0.0
        %419 = vmatprep.subr.mxu0 0.0
        %420 = vmatpush1.msra.mxu0 0.0
        %421 = vmatprep.subr.mxu0 0.0
        %422 = vmatpush1.msra.mxu0 0.0
        %423 = vmatprep.subr.mxu0 0.0
        %424 = vmatpush1.msra.mxu0 0.0
        %425 = vmatprep.subr.mxu0 0.0
        %426 = vmatpush1.msra.mxu0 0.0
        %427 = vmatprep.subr.mxu0 0.0
        %428 = vmatpush1.msra.mxu0 0.0
        %429 = vmatprep.subr.mxu0 0.0
        %430 = vmatpush1.msra.mxu0 0.0
        %431 = vmatprep.subr.mxu0 0.0
        %432 = vmatpush1.msra.mxu0 0.0
        %433 = vmatprep.subr.mxu0 0.0
        %434 = vmatpush1.msra.mxu0 0.0
        %435 = vmatprep.subr.mxu0 0.0
        %436 = vmatpush1.msra.mxu0 0.0
        %437 = vmatprep.subr.mxu0 0.0
        %438 = vmatpush1.msra.mxu0 0.0
        %439 = vmatprep.subr.mxu0 0.0
        %440 = vmatpush1.msra.mxu0 0.0
        %441 = vmatprep.subr.mxu0 0.0
        %442 = vmatpush1.msra.mxu0 0.0
        %443 = vmatprep.subr.mxu0 0.0
        %444 = vmatpush1.msra.mxu0 0.0
        %445 = vmatprep.subr.mxu0 0.0
        %446 = vmatpush1.msra.mxu0 0.0
        %447 = vmatprep.subr.mxu0 0.0
        %448 = vmatpush1.msra.mxu0 0.0
        %449 = vmatprep.subr.mxu0 0.0
        %450 = vmatpush1.msra.mxu0 0.0
        %451 = vmatprep.subr.mxu0 0.0
        %452 = vmatpush1.msra.mxu0 0.0
        %453 = vmatprep.subr.mxu0 0.0
        %454 = vmatpush1.msra.mxu0 0.0
        %455 = vmatprep.subr.mxu0 0.0
        %456 = vmatpush1.msra.mxu0 0.0
        %457 = vmatprep.subr.mxu0 0.0
        %458 = vmatpush1.msra.mxu0 0.0
        %459 = vmatprep.subr.mxu0 0.0
        %460 = vmatpush1.msra.mxu0 0.0
        %461 = vmatprep.subr.mxu0 0.0
        %462 = vmatpush1.msra.mxu0 0.0
        %463 = vmatprep.subr.mxu0 0.0
        %464 = vmatpush1.msra.mxu0 0.0
        %465 = vmatprep.subr.mxu0 0.0
        %466 = vmatpush1.msra.mxu0 0.0
        %467 = vmatprep.subr.mxu0 0.0
        %468 = vmatpush1.msra.mxu0 0.0
        %469 = vmatprep.subr.mxu0 0.0
        %470 = vmatpush1.msra.mxu0 0.0
        %471 = vmatprep.mubr.f32.mxu0 0.0
        %472 = vmatmul.mubr.f32.gmra.mrb[0].mxu0 %v405
        %v473 = vpop.f32.mrb[0].mxu0
        %v474 = vadd.f32 0.0, %v473
        %v475 = vpop.f32.mrb[0].mxu0
        %v476 = vadd.f32 0.0, %v475
        %477 = vdwg.mxu0
        %v478 = vsel %vm259, %v474, 0.0
        %v479 = vrot.slane %v478, 4
        %v480 = vadd.f32 %v478, %v479
        %v481 = vrot.slane %v480, 2
        %v482 = vadd.f32 %v480, %v481
        %v483 = vrot.slane %v482, 1
        %v484 = vadd.f32 %v482, %v483
        %v485 = vsel %vm259, %v476, 0.0
        %v486 = vrot.slane %v485, 4
        %v487 = vadd.f32 %v485, %v486
        %v488 = vrot.slane %v487, 2
        %v489 = vadd.f32 %v487, %v488
        %v490 = vrot.slane %v489, 1
        %v491 = vadd.f32 %v489, %v490
        %v492 = vmul.f32 %v474, %v474
        %v493 = vmul.f32 %v476, %v476
        %v494 = vsel %vm259, %v492, 0.0
        %v495 = vrot.slane %v494, 4
        %v496 = vadd.f32 %v494, %v495
        %v497 = vrot.slane %v496, 2
        %v498 = vadd.f32 %v496, %v497
        %v499 = vrot.slane %v498, 1
        %v500 = vadd.f32 %v498, %v499
        %v501 = vsel %vm259, %v493, 0.0
        %v502 = vrot.slane %v501, 4
        %v503 = vadd.f32 %v501, %v502
        %v504 = vrot.slane %v503, 2
        %v505 = vadd.f32 %v503, %v504
        %v506 = vrot.slane %v505, 1
        %v507 = vadd.f32 %v505, %v506
        %v508 = vmul.f32 %v484, 0.25
        %v509 = vmul.f32 %v491, 0.25
        %v510 = vmul.f32 %v500, 0.25
        %v511 = vmul.f32 %v507, 0.25
        %v512 = vmul.f32 %v508, %v508
        %v513 = vmul.f32 %v509, %v509
        %v514 = vsub.f32 %v510, %v512
        %v515 = vsub.f32 %v511, %v513
        %v516 = vmax.f32 %v514, 0.0
        %v517 = vmax.f32 %v515, 0.0
        %v518 = vsub.f32 %v474, %v508
        %v519 = vsub.f32 %v476, %v509
        %v520 = vadd.f32 %v516, 1e-05
        %v521 = vadd.f32 %v517, 1e-05
        %v522 = vrsqrt.pop %v520
        %v523 = vrsqrt.pop %v521
        %v524 = vmul.f32 %v518, %v522
        %v525 = vmul.f32 %v519, %v523
        %v526 = vmul.f32 %v524, %v386
        %v527 = vmul.f32 %v525, %v386
        %v528 = vadd.f32 %v526, %v393
        %v529 = vadd.f32 %v527, %v393
        %v532 = vcombine.low %v528, %v529
        %s534 = scalar_lea.vmem %s246, 8 [#allocation7]
        %535 = vst [vmem:[%s534] sm:$0xff] %v532
        %s536 = scalar_lea.vmem [#allocation5], 8
        %v537 = vld [vmem:[%s536] sm:$0xf]
        %v539 = vsel %vm255, %v537, 0
        %541 = vmatprep.subr.mxu0 %v262
        %542 = vmatpush1.msra.mxu0 %v260
        %543 = vmatprep.subr.mxu0 0.0
        %544 = vmatpush1.msra.mxu0 0.0
        %545 = vmatprep.subr.mxu0 0.0
        %546 = vmatpush1.msra.mxu0 0.0
        %547 = vmatprep.subr.mxu0 0.0
        %548 = vmatpush1.msra.mxu0 0.0
        %549 = vmatprep.subr.mxu0 0.0
        %550 = vmatpush1.msra.mxu0 0.0
        %551 = vmatprep.subr.mxu0 0.0
        %552 = vmatpush1.msra.mxu0 0.0
        %553 = vmatprep.subr.mxu0 0.0
        %554 = vmatpush1.msra.mxu0 0.0
        %555 = vmatprep.subr.mxu0 0.0
        %556 = vmatpush1.msra.mxu0 0.0
        %557 = vmatprep.subr.mxu0 0.0
        %558 = vmatpush1.msra.mxu0 0.0
        %559 = vmatprep.subr.mxu0 0.0
        %560 = vmatpush1.msra.mxu0 0.0
        %561 = vmatprep.subr.mxu0 0.0
        %562 = vmatpush1.msra.mxu0 0.0
        %563 = vmatprep.subr.mxu0 0.0
        %564 = vmatpush1.msra.mxu0 0.0
        %565 = vmatprep.subr.mxu0 0.0
        %566 = vmatpush1.msra.mxu0 0.0
        %567 = vmatprep.subr.mxu0 0.0
        %568 = vmatpush1.msra.mxu0 0.0
        %569 = vmatprep.subr.mxu0 0.0
        %570 = vmatpush1.msra.mxu0 0.0
        %571 = vmatprep.subr.mxu0 0.0
        %572 = vmatpush1.msra.mxu0 0.0
        %573 = vmatprep.subr.mxu0 0.0
        %574 = vmatpush1.msra.mxu0 0.0
        %575 = vmatprep.subr.mxu0 0.0
        %576 = vmatpush1.msra.mxu0 0.0
        %577 = vmatprep.subr.mxu0 0.0
        %578 = vmatpush1.msra.mxu0 0.0
        %579 = vmatprep.subr.mxu0 0.0
        %580 = vmatpush1.msra.mxu0 0.0
        %581 = vmatprep.subr.mxu0 0.0
        %582 = vmatpush1.msra.mxu0 0.0
        %583 = vmatprep.subr.mxu0 0.0
        %584 = vmatpush1.msra.mxu0 0.0
        %585 = vmatprep.subr.mxu0 0.0
        %586 = vmatpush1.msra.mxu0 0.0
        %587 = vmatprep.subr.mxu0 0.0
        %588 = vmatpush1.msra.mxu0 0.0
        %589 = vmatprep.subr.mxu0 0.0
        %590 = vmatpush1.msra.mxu0 0.0
        %591 = vmatprep.subr.mxu0 0.0
        %592 = vmatpush1.msra.mxu0 0.0
        %593 = vmatprep.subr.mxu0 0.0
        %594 = vmatpush1.msra.mxu0 0.0
        %595 = vmatprep.subr.mxu0 0.0
        %596 = vmatpush1.msra.mxu0 0.0
        %597 = vmatprep.subr.mxu0 0.0
        %598 = vmatpush1.msra.mxu0 0.0
        %599 = vmatprep.subr.mxu0 0.0
        %600 = vmatpush1.msra.mxu0 0.0
        %601 = vmatprep.subr.mxu0 0.0
        %602 = vmatpush1.msra.mxu0 0.0
        %603 = vmatprep.subr.mxu0 0.0
        %604 = vmatpush1.msra.mxu0 0.0
        %605 = vmatprep.mubr.f32.mxu0 0.0
        %606 = vmatmul.mubr.f32.gmra.mrb[0].mxu0 %v539
        %v607 = vpop.f32.mrb[0].mxu0
        %v608 = vadd.f32 0.0, %v607
        %v609 = vpop.f32.mrb[0].mxu0
        %v610 = vadd.f32 0.0, %v609
        %611 = vdwg.mxu0
        %v612 = vsel %vm259, %v608, 0.0
        %v613 = vrot.slane %v612, 4
        %v614 = vadd.f32 %v612, %v613
        %v615 = vrot.slane %v614, 2
        %v616 = vadd.f32 %v614, %v615
        %v617 = vrot.slane %v616, 1
        %v618 = vadd.f32 %v616, %v617
        %v619 = vsel %vm259, %v610, 0.0
        %v620 = vrot.slane %v619, 4
        %v621 = vadd.f32 %v619, %v620
        %v622 = vrot.slane %v621, 2
        %v623 = vadd.f32 %v621, %v622
        %v624 = vrot.slane %v623, 1
        %v625 = vadd.f32 %v623, %v624
        %v626 = vmul.f32 %v608, %v608
        %v627 = vmul.f32 %v610, %v610
        %v628 = vsel %vm259, %v626, 0.0
        %v629 = vrot.slane %v628, 4
        %v630 = vadd.f32 %v628, %v629
        %v631 = vrot.slane %v630, 2
        %v632 = vadd.f32 %v630, %v631
        %v633 = vrot.slane %v632, 1
        %v634 = vadd.f32 %v632, %v633
        %v635 = vsel %vm259, %v627, 0.0
        %v636 = vrot.slane %v635, 4
        %v637 = vadd.f32 %v635, %v636
        %v638 = vrot.slane %v637, 2
        %v639 = vadd.f32 %v637, %v638
        %v640 = vrot.slane %v639, 1
        %v641 = vadd.f32 %v639, %v640
        %v642 = vmul.f32 %v618, 0.25
        %v643 = vmul.f32 %v625, 0.25
        %v644 = vmul.f32 %v634, 0.25
        %v645 = vmul.f32 %v641, 0.25
        %v646 = vmul.f32 %v642, %v642
        %v647 = vmul.f32 %v643, %v643
        %v648 = vsub.f32 %v644, %v646
        %v649 = vsub.f32 %v645, %v647
        %v650 = vmax.f32 %v648, 0.0
        %v651 = vmax.f32 %v649, 0.0
        %v652 = vsub.f32 %v608, %v642
        %v653 = vsub.f32 %v610, %v643
        %v654 = vadd.f32 %v650, 1e-05
        %v655 = vadd.f32 %v651, 1e-05
        %v656 = vrsqrt.pop %v654
        %v657 = vrsqrt.pop %v655
        %v658 = vmul.f32 %v652, %v656
        %v659 = vmul.f32 %v653, %v657
        %v660 = vmul.f32 %v658, %v386
        %v661 = vmul.f32 %v659, %v386
        %v662 = vadd.f32 %v660, %v393
        %v663 = vadd.f32 %v661, %v393
        %v666 = vcombine.low %v662, %v663
        %s668 = scalar_lea.vmem %s246, 16 [#allocation7]
        %669 = vst [vmem:[%s668] sm:$0xff] %v666
        %s670 = scalar_lea.vmem [#allocation5], 12
        %v671 = vld [vmem:[%s670] sm:$0xf]
        %v673 = vsel %vm255, %v671, 0
        %675 = vmatprep.subr.mxu0 %v262
        %676 = vmatpush1.msra.mxu0 %v260
        %677 = vmatprep.subr.mxu0 0.0
        %678 = vmatpush1.msra.mxu0 0.0
        %679 = vmatprep.subr.mxu0 0.0
        %680 = vmatpush1.msra.mxu0 0.0
        %681 = vmatprep.subr.mxu0 0.0
        %682 = vmatpush1.msra.mxu0 0.0
        %683 = vmatprep.subr.mxu0 0.0
        %684 = vmatpush1.msra.mxu0 0.0
        %685 = vmatprep.subr.mxu0 0.0
        %686 = vmatpush1.msra.mxu0 0.0
        %687 = vmatprep.subr.mxu0 0.0
        %688 = vmatpush1.msra.mxu0 0.0
        %689 = vmatprep.subr.mxu0 0.0
        %690 = vmatpush1.msra.mxu0 0.0
        %691 = vmatprep.subr.mxu0 0.0
        %692 = vmatpush1.msra.mxu0 0.0
        %693 = vmatprep.subr.mxu0 0.0
        %694 = vmatpush1.msra.mxu0 0.0
        %695 = vmatprep.subr.mxu0 0.0
        %696 = vmatpush1.msra.mxu0 0.0
        %697 = vmatprep.subr.mxu0 0.0
        %698 = vmatpush1.msra.mxu0 0.0
        %699 = vmatprep.subr.mxu0 0.0
        %700 = vmatpush1.msra.mxu0 0.0
        %701 = vmatprep.subr.mxu0 0.0
        %702 = vmatpush1.msra.mxu0 0.0
        %703 = vmatprep.subr.mxu0 0.0
        %704 = vmatpush1.msra.mxu0 0.0
        %705 = vmatprep.subr.mxu0 0.0
        %706 = vmatpush1.msra.mxu0 0.0
        %707 = vmatprep.subr.mxu0 0.0
        %708 = vmatpush1.msra.mxu0 0.0
        %709 = vmatprep.subr.mxu0 0.0
        %710 = vmatpush1.msra.mxu0 0.0
        %711 = vmatprep.subr.mxu0 0.0
        %712 = vmatpush1.msra.mxu0 0.0
        %713 = vmatprep.subr.mxu0 0.0
        %714 = vmatpush1.msra.mxu0 0.0
        %715 = vmatprep.subr.mxu0 0.0
        %716 = vmatpush1.msra.mxu0 0.0
        %717 = vmatprep.subr.mxu0 0.0
        %718 = vmatpush1.msra.mxu0 0.0
        %719 = vmatprep.subr.mxu0 0.0
        %720 = vmatpush1.msra.mxu0 0.0
        %721 = vmatprep.subr.mxu0 0.0
        %722 = vmatpush1.msra.mxu0 0.0
        %723 = vmatprep.subr.mxu0 0.0
        %724 = vmatpush1.msra.mxu0 0.0
        %725 = vmatprep.subr.mxu0 0.0
        %726 = vmatpush1.msra.mxu0 0.0
        %727 = vmatprep.subr.mxu0 0.0
        %728 = vmatpush1.msra.mxu0 0.0
        %729 = vmatprep.subr.mxu0 0.0
        %730 = vmatpush1.msra.mxu0 0.0
        %731 = vmatprep.subr.mxu0 0.0
        %732 = vmatpush1.msra.mxu0 0.0
        %733 = vmatprep.subr.mxu0 0.0
        %734 = vmatpush1.msra.mxu0 0.0
        %735 = vmatprep.subr.mxu0 0.0
        %736 = vmatpush1.msra.mxu0 0.0
        %737 = vmatprep.subr.mxu0 0.0
        %738 = vmatpush1.msra.mxu0 0.0
        %739 = vmatprep.mubr.f32.mxu0 0.0
        %740 = vmatmul.mubr.f32.gmra.mrb[0].mxu0 %v673
        %v741 = vpop.f32.mrb[0].mxu0
        %v742 = vadd.f32 0.0, %v741
        %v743 = vpop.f32.mrb[0].mxu0
        %v744 = vadd.f32 0.0, %v743
        %745 = vdwg.mxu0
        %v746 = vsel %vm259, %v742, 0.0
        %v747 = vrot.slane %v746, 4
        %v748 = vadd.f32 %v746, %v747
        %v749 = vrot.slane %v748, 2
        %v750 = vadd.f32 %v748, %v749
        %v751 = vrot.slane %v750, 1
        %v752 = vadd.f32 %v750, %v751
        %v753 = vsel %vm259, %v744, 0.0
        %v754 = vrot.slane %v753, 4
        %v755 = vadd.f32 %v753, %v754
        %v756 = vrot.slane %v755, 2
        %v757 = vadd.f32 %v755, %v756
        %v758 = vrot.slane %v757, 1
        %v759 = vadd.f32 %v757, %v758
        %v760 = vmul.f32 %v742, %v742
        %v761 = vmul.f32 %v744, %v744
        %v762 = vsel %vm259, %v760, 0.0
        %v763 = vrot.slane %v762, 4
        %v764 = vadd.f32 %v762, %v763
        %v765 = vrot.slane %v764, 2
        %v766 = vadd.f32 %v764, %v765
        %v767 = vrot.slane %v766, 1
        %v768 = vadd.f32 %v766, %v767
        %v769 = vsel %vm259, %v761, 0.0
        %v770 = vrot.slane %v769, 4
        %v771 = vadd.f32 %v769, %v770
        %v772 = vrot.slane %v771, 2
        %v773 = vadd.f32 %v771, %v772
        %v774 = vrot.slane %v773, 1
        %v775 = vadd.f32 %v773, %v774
        %v776 = vmul.f32 %v752, 0.25
        %v777 = vmul.f32 %v759, 0.25
        %v778 = vmul.f32 %v768, 0.25
        %v779 = vmul.f32 %v775, 0.25
        %v780 = vmul.f32 %v776, %v776
        %v781 = vmul.f32 %v777, %v777
        %v782 = vsub.f32 %v778, %v780
        %v783 = vsub.f32 %v779, %v781
        %v784 = vmax.f32 %v782, 0.0
        %v785 = vmax.f32 %v783, 0.0
        %v786 = vsub.f32 %v742, %v776
        %v787 = vsub.f32 %v744, %v777
        %v788 = vadd.f32 %v784, 1e-05
        %v789 = vadd.f32 %v785, 1e-05
        %v790 = vrsqrt.pop %v788
        %v791 = vrsqrt.pop %v789
        %v792 = vmul.f32 %v786, %v790
        %v793 = vmul.f32 %v787, %v791
        %v794 = vmul.f32 %v792, %v386
        %v795 = vmul.f32 %v793, %v386
        %v796 = vadd.f32 %v794, %v393
        %v797 = vadd.f32 %v795, %v393
        %v800 = vcombine.low %v796, %v797
        %s802 = scalar_lea.vmem %s246, 24 [#allocation7]
        %803 = vst [vmem:[%s802] sm:$0xff] %v800
        %s804 = sand.u32 %s135, 1
        %s805 = scalar_lea.sflag [#allocation4], %s804
        %s806 = sand.u32 %s135, 1
        %s807 = smul.addr %s806, 32
        %s808 = scalar_lea.vmem [#allocation7], %s807
        // Predicated region
        $region45: #{tpu_custom_call.1} parent=35 // pred_check
          %p809 = pneg %p145
        $region46: #{tpu_custom_call.1} parent=35 // pred_check_branch
          %811 = sbr.rel (%p809) target = $region48
        $region47: #{tpu_custom_call.1} parent=35 // pred_region
          %s812 = smul.u32 2, %s27
          %s814 = ssub.s32 512, 512
          %815 = vsyncadd %s805, %s814
          %s816 = smul.addr %s26, 8
          %s817 = sadd.s32 %s812, %s816
          %s818 = smul.addr %s817, 64
          %s819 = scalar_lea.hbm %s4, %s818
          %s820 = sshll.u32 %s808, 4
          %s821 = int_to_ptr.vmem [resolvable:$true] %s820
          %826 = dma.vmem_to_hbm [thread:$0]  %s821, 512, %s819, %s805, 128, 128, 8
        $region48: #{tpu_custom_call.1} parent=35 // pred_fallthru
          _
      $region36: #{tpu_custom_call.1} parent=5 // pred_fallthru
        _
      %p827 = scmp.le.s32.totalorder 2, %s17
      // Predicated region
      $region49: #{tpu_custom_call.1} parent=5 // pred_check
        %p828 = pneg %p827
      $region50: #{tpu_custom_call.1} parent=5 // pred_check_branch
        %830 = sbr.rel (%p828) target = $region52
      $region51: #{tpu_custom_call.1} parent=5 // pred_region
        %s831 = ssub.s32 %s17, 2
        // Predicated region
        $region53: #{tpu_custom_call.1} parent=51 // pred_check
          %p832 = pneg %p151
        $region54: #{tpu_custom_call.1} parent=51 // pred_check_branch
          %834 = sbr.rel (%p832) target = $region56
        $region55: #{tpu_custom_call.1} parent=51 // pred_region
          %s835 = sand.u32 %s136, 1
          %s836 = scalar_lea.sflag [#allocation4], %s835
          %s837 = sand.u32 %s136, 1
          %s838 = smul.addr %s837, 32
          %s839 = scalar_lea.vmem [#allocation7], %s838
          %840 = dma.done %s836, 512
        $region56: #{tpu_custom_call.1} parent=51 // pred_fallthru
          _
      $region52: #{tpu_custom_call.1} parent=5 // pred_fallthru
        _
    $region6: #{tpu_custom_call.1} parent=1 // loop_footer
      %s21 = sadd.s32 1, %s17
    $region7: #{tpu_custom_call.1} parent=1 // loop_footer_branch
      %16 = sbr.rel target = $region3
    $region8: #{tpu_custom_call.1} parent=1 // loop_exit
      _
    %841 = vsyncpa [#allocation3], 1
    %s842 = scalar_lea.sflag [#allocation3], 1
    %843 = vsyncpa %s842, 1
    %844 = vsyncpa [#allocation6], 1
    %845 = vsyncpa [#allocation4], 1
    %s846 = scalar_lea.sflag [#allocation4], 1
    %847 = vsyncpa %s846, 1

</llo_original>
